<compile_context>
chip_gen: v7x
topology: tpu7x:2x2x1
jax: 0.10.0
libtpu: 0.0.40
codegen_flags: <defaults>
</compile_context>

<pallas_src>
import functools

import jax
import jax.numpy as jnp
from jax.experimental import pallas as pl
from jax.experimental.pallas import tpu as pltpu


def _pos_embed_kernel(idx_ref, table_ref, *rest, fold, tag_len,
                      drop_threshold, keep_scale):
    # idx_ref   : (TILE_ROWS, fold)            int32   VMEM
    # table_ref : (fold*tag_len, fold*tag_dim) f32     VMEM (block-diag replicated table)
    # bits_ref  : (TILE_ROWS, fold*tag_dim)    int32   VMEM (only when dropout active)
    # out_ref   : (TILE_ROWS, fold*tag_dim)    f32     VMEM
    if drop_threshold is not None:
        bits_ref, out_ref = rest
    else:
        (out_ref,) = rest

    idx = idx_ref[...]                                   # (rows, fold)
    rows = idx.shape[0]
    kt = fold * tag_len

    # Block-concatenated one-hot: column j*tag_len + v is 1 iff idx[:, j] == v.
    # Built with `fold` broadcast compares (no concatenate / relayout needed).
    lane = jax.lax.broadcasted_iota(jnp.int32, (rows, kt), 1)
    one_hot = jnp.zeros((rows, kt), dtype=table_ref.dtype)
    for j in range(fold):                                # fold is small & static
        shifted = idx[:, j:j + 1] + j * tag_len          # (rows, 1)
        one_hot = one_hot + (lane == shifted).astype(table_ref.dtype)

    # Gather on the MXU. Block-diagonal table places token j's embedding at
    # lanes [j*tag_dim, (j+1)*tag_dim) -> lane-dense output row.
    emb = jnp.dot(one_hot, table_ref[...],
                  preferred_element_type=jnp.float32)    # (rows, fold*tag_dim)

    if drop_threshold is not None:
        # Inverted dropout via signed-int threshold: bits are uniform int32,
        # P(bits < drop_threshold) == drop_rate.
        keep = bits_ref[...] >= jnp.int32(drop_threshold)
        emb = jnp.where(keep, emb * keep_scale, 0.0)

    out_ref[...] = emb.astype(out_ref.dtype)


def pos_embeddings_forward(words_seq, table, *, drop_rate=0.0, training=False,
                           rng_key=None):
    """Forward pass of POSEmbeddings.

    words_seq : (B, S) int32 tag ids in [0, tag_len)
    table     : (tag_len, tag_dim) float32, row 0 must be zeros (padding_idx=0)
    returns   : (B, S, tag_dim) float32
    """
    b, s = words_seq.shape
    t, d = table.shape
    n = b * s

    apply_dropout = bool(training) and float(drop_rate) > 0.0
    if apply_dropout:
        assert 0.0 < float(drop_rate) < 1.0, "drop_rate must be in (0, 1) when training"
        if rng_key is None:
            rng_key = jax.random.PRNGKey(0)

    # Fold factor: pack `fold` tokens per 128-lane output row when possible.
    # TODO(synk): tag_dim that does not divide 128 falls back to fold=1 (masked stores).
    fold = (128 // d) if (d <= 128 and 128 % d == 0) else 1
    out_w = fold * d

    # Tiling over folded rows (each row = `fold` tokens).
    rows = -(-n // fold)
    tile_rows = min(256, ((rows + 7) // 8) * 8)          # multiple of 8 (f32 sublane)
    num_tiles = -(-rows // tile_rows)
    rows_pad = num_tiles * tile_rows
    n_pad = rows_pad * fold

    # Pad with index 0 (padding row -> zero embedding), fold into (rows_pad, fold).
    idx_flat = words_seq.reshape(-1).astype(jnp.int32)
    idx_flat = jnp.pad(idx_flat, (0, n_pad - n))
    idx2d = idx_flat.reshape(rows_pad, fold)

    # Block-diagonal (fold-replicated) table: (fold*t, fold*d).
    table_bd = jnp.kron(jnp.eye(fold, dtype=table.dtype), table) if fold > 1 else table

    in_specs = [
        pl.BlockSpec((tile_rows, fold), lambda i: (i, 0)),        # indices
        pl.BlockSpec((fold * t, out_w), lambda i: (0, 0)),        # table (resident)
    ]
    args = [idx2d, table_bd]

    drop_threshold = None
    keep_scale = 1.0
    if apply_dropout:
        # Uniform uint32 bits generated outside the kernel, viewed as int32
        # (uniform over the full int32 range -> signed threshold compare).
        thr_u = min(int(round(float(drop_rate) * 2.0 ** 32)), 2 ** 32 - 1)
        drop_threshold = thr_u - 2 ** 31
        keep_scale = 1.0 / (1.0 - float(drop_rate))
        bits_u32 = jax.random.bits(rng_key, (rows_pad, out_w), dtype=jnp.uint32)
        bits_i32 = jax.lax.bitcast_convert_type(bits_u32, jnp.int32)
        in_specs.append(pl.BlockSpec((tile_rows, out_w), lambda i: (i, 0)))
        args.append(bits_i32)

    kernel = functools.partial(_pos_embed_kernel, fold=fold, tag_len=t,
                               drop_threshold=drop_threshold,
                               keep_scale=keep_scale)

    # Advisory cost estimate for XLA's scheduler.
    flops = 2 * rows_pad * (fold * t) * out_w
    bytes_accessed = (idx2d.size * 4 + table_bd.size * 4
                      + rows_pad * out_w * 4
                      + (rows_pad * out_w * 4 if apply_dropout else 0))

    # VMEM budget: double-buffered idx/bits/out tiles + resident table + one-hot.
    tile_bytes = (2 * (tile_rows * fold * 4 + tile_rows * out_w * 4
                       + (tile_rows * out_w * 4 if apply_dropout else 0))
                  + fold * t * out_w * 4 + tile_rows * fold * t * 4)
    vmem_limit = int(min(64 * 1024 * 1024, max(32 * 1024 * 1024, 4 * tile_bytes)))

    out2d = pl.pallas_call(
        kernel,
        out_shape=jax.ShapeDtypeStruct((rows_pad, out_w), table.dtype),
        grid=(num_tiles,),
        in_specs=in_specs,
        out_specs=pl.BlockSpec((tile_rows, out_w), lambda i: (i, 0)),
        compiler_params=pltpu.CompilerParams(
            dimension_semantics=("parallel",),
            vmem_limit_bytes=vmem_limit),
        cost_estimate=pl.CostEstimate(flops=flops, transcendentals=0,
                                      bytes_accessed=bytes_accessed),
    )(*args)

    out = out2d.reshape(rows_pad * fold, d)[:n]
    return out.reshape(b, s, d)


def init_pos_embeddings(key, tag_len, tag_dim):
    """Mimics nn.Embedding(tag_len, tag_dim, padding_idx=0): row 0 is zero."""
    table = jax.random.normal(key, (tag_len, tag_dim), dtype=jnp.float32)
    return table.at[0].set(0.0)


if __name__ == "__main__":
    B, S = 2, 8
    TAG_LEN, TAG_DIM = 16, 32
    DROP_RATE = 0.1

    key = jax.random.PRNGKey(0)
    k_tab, k_idx, k_drop = jax.random.split(key, 3)

    table = init_pos_embeddings(k_tab, TAG_LEN, TAG_DIM)
    words_seq = jax.random.randint(k_idx, (B, S), minval=0, maxval=TAG_LEN,
                                   dtype=jnp.int32)

    # Eval mode: dropout is identity; compare against pure-JAX reference gather.
    out_eval = pos_embeddings_forward(words_seq, table,
                                      drop_rate=DROP_RATE, training=False)
    out_eval = jax.block_until_ready(out_eval)
    ref = jnp.take(table, words_seq, axis=0)
    assert out_eval.shape == (B, S, TAG_DIM)
    assert jnp.allclose(out_eval, ref, atol=1e-5), "mismatch vs reference lookup"

    # Training mode: every element must be either 0 (dropped) or ref/(1-p) (kept).
    out_train = pos_embeddings_forward(words_seq, table, drop_rate=DROP_RATE,
                                       training=True, rng_key=k_drop)
    out_train = jax.block_until_ready(out_train)
    assert out_train.shape == (B, S, TAG_DIM)
    scaled = ref / (1.0 - DROP_RATE)
    ok = jnp.isclose(out_train, 0.0, atol=1e-6) | jnp.isclose(out_train, scaled,
                                                              atol=1e-5)
    assert bool(jnp.all(ok)), "dropout output is not {0, ref/(1-p)}"

    print("KERNEL_OK")
</pallas_src>

<mosaic_0001>
module attributes {stable_mosaic.version = 11 : i64} {
  func.func @_pos_embed_kernel(%arg0: i32, %arg1: memref<8x4xi32, #tpu.memory_space<vmem>>, %arg2: memref<64x128xf32, #tpu.memory_space<vmem>>, %arg3: memref<8x128xf32, #tpu.memory_space<vmem>>) attributes {dimension_semantics = [#tpu.dimension_semantics<parallel>], iteration_bounds = array<i64: 1>, scalar_prefetch = 0 : i64, scratch_operands = 0 : i64, tpu.core_type = #tpu.core_type<tc>, window_params = [{transform_indices = @transform_0, window_bounds = array<i64: 8, 4>}, {pipeline_mode = #tpu.pipeline_mode<synchronous>, transform_indices = @transform_1, window_bounds = array<i64: 64, 128>}, {transform_indices = @transform_2, window_bounds = array<i64: 8, 128>}]} {
    %c0 = arith.constant 0 : index
    %c0_0 = arith.constant 0 : index
    %0 = vector.load %arg1[%c0, %c0_0] : memref<8x4xi32, #tpu.memory_space<vmem>>, vector<8x4xi32>
    %1 = tpu.iota {dimensions = array<i32: 1>} : vector<8x64xi32>
    %cst = arith.constant 0.000000e+00 : f32
    %2 = vector.broadcast %cst : f32 to vector<8x64xf32>
    %3 = vector.extract_strided_slice %0 {offsets = [0, 0], sizes = [8, 1], strides = [1, 1]} : vector<8x4xi32> to vector<8x1xi32>
    %c0_i32 = arith.constant 0 : i32
    %4 = vector.broadcast %c0_i32 : i32 to vector<8x1xi32>
    %5 = arith.addi %3, %4 : vector<8x1xi32>
    %6 = vector.broadcast %5 : vector<8x1xi32> to vector<8x64xi32>
    %7 = arith.cmpi eq, %1, %6 : vector<8x64xi32>
    %8 = arith.extui %7 : vector<8x64xi1> to vector<8x64xi32>
    %9 = arith.sitofp %8 : vector<8x64xi32> to vector<8x64xf32>
    %10 = arith.addf %2, %9 : vector<8x64xf32>
    %11 = vector.extract_strided_slice %0 {offsets = [0, 1], sizes = [8, 1], strides = [1, 1]} : vector<8x4xi32> to vector<8x1xi32>
    %c16_i32 = arith.constant 16 : i32
    %12 = vector.broadcast %c16_i32 : i32 to vector<8x1xi32>
    %13 = arith.addi %11, %12 : vector<8x1xi32>
    %14 = vector.broadcast %13 : vector<8x1xi32> to vector<8x64xi32>
    %15 = arith.cmpi eq, %1, %14 : vector<8x64xi32>
    %16 = arith.extui %15 : vector<8x64xi1> to vector<8x64xi32>
    %17 = arith.sitofp %16 : vector<8x64xi32> to vector<8x64xf32>
    %18 = arith.addf %10, %17 : vector<8x64xf32>
    %19 = vector.extract_strided_slice %0 {offsets = [0, 2], sizes = [8, 1], strides = [1, 1]} : vector<8x4xi32> to vector<8x1xi32>
    %c32_i32 = arith.constant 32 : i32
    %20 = vector.broadcast %c32_i32 : i32 to vector<8x1xi32>
    %21 = arith.addi %19, %20 : vector<8x1xi32>
    %22 = vector.broadcast %21 : vector<8x1xi32> to vector<8x64xi32>
    %23 = arith.cmpi eq, %1, %22 : vector<8x64xi32>
    %24 = arith.extui %23 : vector<8x64xi1> to vector<8x64xi32>
    %25 = arith.sitofp %24 : vector<8x64xi32> to vector<8x64xf32>
    %26 = arith.addf %18, %25 : vector<8x64xf32>
    %27 = vector.extract_strided_slice %0 {offsets = [0, 3], sizes = [8, 1], strides = [1, 1]} : vector<8x4xi32> to vector<8x1xi32>
    %c48_i32 = arith.constant 48 : i32
    %28 = vector.broadcast %c48_i32 : i32 to vector<8x1xi32>
    %29 = arith.addi %27, %28 : vector<8x1xi32>
    %30 = vector.broadcast %29 : vector<8x1xi32> to vector<8x64xi32>
    %31 = arith.cmpi eq, %1, %30 : vector<8x64xi32>
    %32 = arith.extui %31 : vector<8x64xi1> to vector<8x64xi32>
    %33 = arith.sitofp %32 : vector<8x64xi32> to vector<8x64xf32>
    %34 = arith.addf %26, %33 : vector<8x64xf32>
    %c0_1 = arith.constant 0 : index
    %c0_2 = arith.constant 0 : index
    %35 = vector.load %arg2[%c0_1, %c0_2] : memref<64x128xf32, #tpu.memory_space<vmem>>, vector<64x128xf32>
    %cst_3 = arith.constant dense<0.000000e+00> : vector<8x128xf32>
    %36 = tpu.matmul %34, %35, %cst_3 {dimension_numbers = #tpu.dot_dimension_numbers<[1], [0], [0], [1], [0, 0, 1, 1], [], []>} : vector<8x64xf32>, vector<64x128xf32>, vector<8x128xf32> -> vector<8x128xf32>
    %c0_4 = arith.constant 0 : index
    %c0_5 = arith.constant 0 : index
    %37 = vector.load %arg3[%c0_4, %c0_5] : memref<8x128xf32, #tpu.memory_space<vmem>>, vector<8x128xf32>
    tpu.vector_store %arg3[%c0_4, %c0_5], %36 {strides = array<i32>} : memref<8x128xf32, #tpu.memory_space<vmem>>, vector<8x128xf32>,
    return
  }
  func.func @transform_0(%arg0: i32) -> (i32, i32) {
    %c0_i32 = arith.constant 0 : i32
    %c0_i32_0 = arith.constant 0 : i32
    return %arg0, %c0_i32 : i32, i32
  }
  func.func @transform_1(%arg0: i32) -> (i32, i32) {
    %c0_i32 = arith.constant 0 : i32
    %c0_i32_0 = arith.constant 0 : i32
    %c0_i32_1 = arith.constant 0 : i32
    return %c0_i32, %c0_i32_0 : i32, i32
  }
  func.func @transform_2(%arg0: i32) -> (i32, i32) {
    %c0_i32 = arith.constant 0 : i32
    %c0_i32_0 = arith.constant 0 : i32
    return %arg0, %c0_i32 : i32, i32
  }
}

</mosaic_0001>

<llo_original>
// kernel: tpu_custom_call.1
$region0: #{tpu_custom_call.1}
  #allocation0 [shape = 'u32[]', space=smem, size = 0x4, offset = 0x4, fixed_abs, tag = 'smem constant byte address 0x4 - core index']
  #allocation1 [shape = 'u32[144,128]{1,0:T(1,128)}', space=vmem, size = 0x12000, scoped, tag = 'internal scratch']
  %s0 = inlined_call_operand.vmem [shape: s32[8,4], index: 0, kind: input, shape index: {}]
  %s1 = inlined_call_operand.hbm [shape: f32[64,128], index: 1, kind: input, shape index: {}]
  %s2 = inlined_call_operand.hbm [shape: f32[8,128], index: 2, kind: output, shape index: {}]
  %s3 = sld [smem:[#allocation0]]
  $region22: #{tpu_custom_call.1} parent=0
    _
  %s5 = ssub.s32 1, %s3
  %s6 = scalar_select 0, %s5, %s3
  $region1: #{tpu_custom_call.1} parent=0
    #allocation2 [shape = 'u8[32768]{0}', space=vmem, size = 0x8000, scoped, tag = 'input window, operand 1, single buffered']
    #allocation3 [shape = 's32[1]{0}', space=sflag, size = 0x4, scoped, tag = 'scoped memory for tpu_custom_call.1']
    #allocation4 [shape = 's32[1]{0}', space=sflag, size = 0x4, scoped, tag = 'scoped memory for tpu_custom_call.1']
    #allocation5 [shape = 'u8[4096]{0}', space=vmem, size = 0x1000, scoped, tag = 'output window, operand 0, single buffered']
    %7 = vsyncpa [#allocation3], 0
    %8 = vsyncpa [#allocation4], 0
    // Predicated region
    $region2: #{tpu_custom_call.1} parent=1 // pred_check
      _
    $region3: #{tpu_custom_call.1} parent=1 // pred_check_branch
      %10 = sbr.rel (0) target = $region5
    $region4: #{tpu_custom_call.1} parent=1 // pred_region
      _
    $region5: #{tpu_custom_call.1} parent=1 // pred_fallthru
      _
    // Predicated region
    $region6: #{tpu_custom_call.1} parent=1 // pred_check
      _
    $region7: #{tpu_custom_call.1} parent=1 // pred_check_branch
      %12 = sbr.rel (0) target = $region9
    $region8: #{tpu_custom_call.1} parent=1 // pred_region
      %s14 = ssub.s32 1024, 1024
      %15 = vsyncadd [#allocation3], %s14
      %s16 = sshll.u32 [#allocation2], 4
      %s17 = int_to_ptr.vmem [resolvable:$true] %s16
      %22 = dma.hbm_to_vmem [thread:$0]  %s1, 1024, %s17, [#allocation3], 128, 128, 8
    $region9: #{tpu_custom_call.1} parent=1 // pred_fallthru
      _
    // Predicated region
    $region10: #{tpu_custom_call.1} parent=1 // pred_check
      _
    $region11: #{tpu_custom_call.1} parent=1 // pred_check_branch
      %24 = sbr.rel (0) target = $region13
    $region12: #{tpu_custom_call.1} parent=1 // pred_region
      %25 = dma.done [#allocation3], 1024
    $region13: #{tpu_custom_call.1} parent=1 // pred_fallthru
      _
    %v26 = vld [vmem:[%s0] sm:$0xff]
    %v27 = vlaneseq
    %v28 = vand.u32 %v27, 127
    %29 = vset.pattern.permute.xlu0 0
    %30 = vperm.xlu0 %29, %v26
    %v31 = vpop.permute.xlu0 %30
    %vm32 = vcmp.eq.s32.totalorder %v28, %v31
    %v33 = vsel %vm32, 1, 0
    %v34 = vcvt.s32.f32 %v33
    %v35 = vadd.f32 %v34, 0.0
    %v36 = vadd.s32 %v26, 16
    %37 = vset.pattern.permute.xlu0 1
    %38 = vperm.xlu0 %37, %v36
    %v39 = vpop.permute.xlu0 %38
    %vm40 = vcmp.eq.s32.totalorder %v28, %v39
    %v41 = vsel %vm40, 1, 0
    %v42 = vcvt.s32.f32 %v41
    %v43 = vadd.f32 %v35, %v42
    %v44 = vadd.s32 %v26, 32
    %45 = vset.pattern.permute.xlu0 2
    %46 = vperm.xlu0 %45, %v44
    %v47 = vpop.permute.xlu0 %46
    %vm48 = vcmp.eq.s32.totalorder %v28, %v47
    %v49 = vsel %vm48, 1, 0
    %v50 = vcvt.s32.f32 %v49
    %v51 = vadd.f32 %v43, %v50
    %v52 = vadd.s32 %v26, 48
    %53 = vset.pattern.permute.xlu0 3
    %54 = vperm.xlu0 %53, %v52
    %v55 = vpop.permute.xlu0 %54
    %vm56 = vcmp.eq.s32.totalorder %v28, %v55
    %v57 = vsel %vm56, 1, 0
    %v58 = vcvt.s32.f32 %v57
    %v59 = vadd.f32 %v51, %v58
    %v60 = vld [vmem:[#allocation2] sm:$0xff]
    %v61 = vld [vmem:[#allocation2 + $0x8] sm:$0xff]
    %v62 = vld [vmem:[#allocation2 + $0x10] sm:$0xff]
    %v63 = vld [vmem:[#allocation2 + $0x18] sm:$0xff]
    %v64 = vld [vmem:[#allocation2 + $0x20] sm:$0xff]
    %v65 = vld [vmem:[#allocation2 + $0x28] sm:$0xff]
    %v66 = vld [vmem:[#allocation2 + $0x30] sm:$0xff]
    %v67 = vld [vmem:[#allocation2 + $0x38] sm:$0xff]
    %vm68 = vcmask 523264
    %v70 = vsel %vm68, %v59, 0
    %72 = vmatprep.subr.mxu0 0.0
    %73 = vmatpush1.msra.mxu0 %v60
    %74 = vmatprep.subr.mxu0 0.0
    %75 = vmatpush1.msra.mxu0 %v61
    %76 = vmatprep.subr.mxu0 0.0
    %77 = vmatpush1.msra.mxu0 %v62
    %78 = vmatprep.subr.mxu0 0.0
    %79 = vmatpush1.msra.mxu0 %v63
    %80 = vmatprep.subr.mxu0 0.0
    %81 = vmatpush1.msra.mxu0 %v64
    %82 = vmatprep.subr.mxu0 0.0
    %83 = vmatpush1.msra.mxu0 %v65
    %84 = vmatprep.subr.mxu0 0.0
    %85 = vmatpush1.msra.mxu0 %v66
    %86 = vmatprep.subr.mxu0 0.0
    %87 = vmatpush1.msra.mxu0 %v67
    %88 = vmatprep.subr.mxu0 0.0
    %89 = vmatpush1.msra.mxu0 0.0
    %90 = vmatprep.subr.mxu0 0.0
    %91 = vmatpush1.msra.mxu0 0.0
    %92 = vmatprep.subr.mxu0 0.0
    %93 = vmatpush1.msra.mxu0 0.0
    %94 = vmatprep.subr.mxu0 0.0
    %95 = vmatpush1.msra.mxu0 0.0
    %96 = vmatprep.subr.mxu0 0.0
    %97 = vmatpush1.msra.mxu0 0.0
    %98 = vmatprep.subr.mxu0 0.0
    %99 = vmatpush1.msra.mxu0 0.0
    %100 = vmatprep.subr.mxu0 0.0
    %101 = vmatpush1.msra.mxu0 0.0
    %102 = vmatprep.subr.mxu0 0.0
    %103 = vmatpush1.msra.mxu0 0.0
    %104 = vmatprep.subr.mxu0 0.0
    %105 = vmatpush1.msra.mxu0 0.0
    %106 = vmatprep.subr.mxu0 0.0
    %107 = vmatpush1.msra.mxu0 0.0
    %108 = vmatprep.subr.mxu0 0.0
    %109 = vmatpush1.msra.mxu0 0.0
    %110 = vmatprep.subr.mxu0 0.0
    %111 = vmatpush1.msra.mxu0 0.0
    %112 = vmatprep.subr.mxu0 0.0
    %113 = vmatpush1.msra.mxu0 0.0
    %114 = vmatprep.subr.mxu0 0.0
    %115 = vmatpush1.msra.mxu0 0.0
    %116 = vmatprep.subr.mxu0 0.0
    %117 = vmatpush1.msra.mxu0 0.0
    %118 = vmatprep.subr.mxu0 0.0
    %119 = vmatpush1.msra.mxu0 0.0
    %120 = vmatprep.subr.mxu0 0.0
    %121 = vmatpush1.msra.mxu0 0.0
    %122 = vmatprep.subr.mxu0 0.0
    %123 = vmatpush1.msra.mxu0 0.0
    %124 = vmatprep.subr.mxu0 0.0
    %125 = vmatpush1.msra.mxu0 0.0
    %126 = vmatprep.subr.mxu0 0.0
    %127 = vmatpush1.msra.mxu0 0.0
    %128 = vmatprep.subr.mxu0 0.0
    %129 = vmatpush1.msra.mxu0 0.0
    %130 = vmatprep.subr.mxu0 0.0
    %131 = vmatpush1.msra.mxu0 0.0
    %132 = vmatprep.subr.mxu0 0.0
    %133 = vmatpush1.msra.mxu0 0.0
    %134 = vmatprep.subr.mxu0 0.0
    %135 = vmatpush1.msra.mxu0 0.0
    %136 = vmatprep.mubr.f32.mxu0 0.0
    %137 = vmatmul.mubr.f32.gmra.mrb[0].mxu0 %v70
    %v138 = vpop.f32.mrb[0].mxu0
    %v139 = vadd.f32 0.0, %v138
    %v140 = vpop.f32.mrb[0].mxu0
    %141 = vdwg.mxu0
    %142 = vst [vmem:[#allocation5] sm:$0xff] %v139
    // Predicated region
    $region14: #{tpu_custom_call.1} parent=1 // pred_check
      _
    $region15: #{tpu_custom_call.1} parent=1 // pred_check_branch
      %144 = sbr.rel (0) target = $region17
    $region16: #{tpu_custom_call.1} parent=1 // pred_region
      %s146 = ssub.s32 128, 128
      %147 = vsyncadd [#allocation4], %s146
      %s149 = sshll.u32 [#allocation5], 4
      %s150 = int_to_ptr.vmem [resolvable:$true] %s149
      %152 = dma.vmem_to_hbm [thread:$0]  %s150, 128, %s2, [#allocation4]
    $region17: #{tpu_custom_call.1} parent=1 // pred_fallthru
      _
    // Predicated region
    $region18: #{tpu_custom_call.1} parent=1 // pred_check
      _
    $region19: #{tpu_custom_call.1} parent=1 // pred_check_branch
      %154 = sbr.rel (0) target = $region21
    $region20: #{tpu_custom_call.1} parent=1 // pred_region
      %155 = dma.done [#allocation4], 128
    $region21: #{tpu_custom_call.1} parent=1 // pred_fallthru
      _
    %156 = vsyncpa [#allocation3], 1
    %157 = vsyncpa [#allocation4], 1

</llo_original>
